<compile_context>
chip_gen: v7x
topology: tpu7x:2x2x1
jax: 0.10.0
libtpu: 0.0.40
codegen_flags: <defaults>
</compile_context>

<pallas_src>
import functools

import jax
import jax.numpy as jnp
from jax.experimental import pallas as pl
from jax.experimental.pallas import tpu as pltpu


# ----------------------------- Pallas kernel --------------------------------

def policy_net_1d_kernel(x_ref, w1_ref, b1_ref, w2_ref, out_ref, *, ra, a):
    """Whole forward pass in one grid point.

    Shapes (D = input_size, R = reward_types, Hp = padded hidden, A = actions,
    L = output lane count, a multiple of 128 >= R*A + A):
      x_ref   (1, D)        f32 input state
      w1_ref  (D, R*Hp)     bf16 fused layer-1 weights (all heads, lane-concat)
      b1_ref  (1, R*Hp)     f32 fused layer-1 biases; lane R*Hp-1 is 1.0 so the
                            constant hidden lane carries layer-2 / actor biases
      w2_ref  (R*Hp, L)     bf16: block-diagonal layer-2 weights (cols 0..R*A-1)
                            and precomposed actor weights W2@Wa (+ba on the
                            constant row) in cols R*A..R*A+A-1; zero padding after
      out_ref (1, L)        f32: comb in lanes [0, R*A), prob in [R*A, R*A+A)
    """
    # Layer 1 (+bias) + ReLU for all heads in one dot (bf16 operands, f32 acc).
    x = x_ref[...].astype(jnp.bfloat16)                                # (1, D)
    h = jnp.maximum(
        jnp.dot(x, w1_ref[...], preferred_element_type=jnp.float32)
        + b1_ref[...], 0.0)                                            # (1, R*Hp) f32

    # Layer 2 + precomposed actor layer in ONE block matmul.
    out = jnp.dot(h.astype(jnp.bfloat16), w2_ref[...],
                  preferred_element_type=jnp.float32)                  # (1, L)

    # Softmax over the logit lanes only (padded / comb lanes masked out).
    lane = jax.lax.broadcasted_iota(jnp.int32, out.shape, 1)
    is_logit = (lane >= ra) & (lane < ra + a)
    masked = jnp.where(is_logit, out, jnp.float32(-1e30))
    m = jnp.max(masked, axis=-1, keepdims=True)
    e = jnp.where(is_logit, jnp.exp(masked - m), 0.0)
    inv = pl.reciprocal(jnp.sum(e, axis=-1, keepdims=True), approx=True)

    # Single dense 128-lane store: comb lanes pass through, logit lanes -> prob.
    out_ref[...] = jnp.where(is_logit, e * inv, out)


# ------------------------------- wrapper -------------------------------------

def policy_net_1d(x, packed):
    """x: (input_size,) f32. packed: dict from pack_params. Returns (prob, comb)."""
    R, A = packed["reward_types"], packed["actions"]
    ra = R * A
    lanes = packed["out_lanes"]

    x2 = x.astype(jnp.float32).reshape(1, -1)
    vmem = pl.BlockSpec(memory_space=pltpu.MemorySpace.VMEM)
    kernel = functools.partial(policy_net_1d_kernel, ra=ra, a=A)

    out = pl.pallas_call(
        kernel,
        out_shape=jax.ShapeDtypeStruct((1, lanes), jnp.float32),
        in_specs=[vmem, vmem, vmem, vmem],
        out_specs=vmem,
    )(x2, packed["w1"], packed["b1"], packed["w2cat"])

    comb = out[0, :ra].reshape(R, A)
    prob = out[0, ra:ra + A]
    return prob, comb


# ------------------- deterministic parameter construction --------------------

def _fanio_uniform(key, shape_out_in):
    """Mimics `weights_init` for nn.Linear: U(-b, b), b = sqrt(6/(fan_in+fan_out))."""
    fan_out, fan_in = shape_out_in
    bound = jnp.sqrt(6.0 / (fan_in + fan_out))
    return jax.random.uniform(key, shape_out_in, jnp.float32, -bound, bound)


def _normalized_columns(key, shape_out_in, std=0.01):
    """normalized_columns_initializer: randn scaled so each output row has norm std."""
    w = jax.random.normal(key, shape_out_in, jnp.float32)
    return w * (std / jnp.sqrt(jnp.sum(w * w, axis=1, keepdims=True)))


def make_params(key, input_size, actions, reward_types, hidden=120):
    """Raw (torch-equivalent, already in->out transposed) parameters."""
    keys = jax.random.split(key, 2 * reward_types + 1)
    w1, w2 = [], []
    for r in range(reward_types):
        w1.append(_fanio_uniform(keys[2 * r], (hidden, input_size)).T)   # (D, H)
        w2.append(_fanio_uniform(keys[2 * r + 1], (actions, hidden)).T)  # (H, A)
    wa = _normalized_columns(keys[-1], (actions, reward_types * actions), 0.01).T
    return {
        "w1": jnp.stack(w1),                                   # (R, D, H)
        "b1": jnp.zeros((reward_types, hidden), jnp.float32),  # weights_init: bias 0
        "w2": jnp.stack(w2),                                   # (R, H, A)
        "b2": jnp.zeros((reward_types, actions), jnp.float32),
        "wa": wa,                                              # (R*A, A)
        "ba": jnp.zeros((1, actions), jnp.float32),            # fill_(0)
    }


def _padded_hidden(h, mult=128):
    """Smallest multiple of `mult` >= h with at least one spare padding lane."""
    hp = -(-h // mult) * mult
    return hp if hp > h else hp + mult


def pack_params(params, lane=128):
    """Repack raw params into the fused kernel layout (one-time, wrapper-side)."""
    w1, b1, w2, b2 = params["w1"], params["b1"], params["w2"], params["b2"]
    wa, ba = params["wa"], params["ba"]
    R, D, H = w1.shape
    A = w2.shape[-1]
    Hp = _padded_hidden(H)                       # 120 -> 128 (lane aligned)
    const = R * Hp - 1                           # spare padding lane -> constant 1.0
    ra = R * A

    # Fused layer-1 weights / biases (heads concatenated on the lane axis).
    w1f = jnp.zeros((D, R * Hp), jnp.float32)
    b1f = jnp.zeros((1, R * Hp), jnp.float32)
    w2f = jnp.zeros((R * Hp, ra), jnp.float32)   # block-diagonal layer 2
    for r in range(R):
        w1f = w1f.at[:, r * Hp:r * Hp + H].set(w1[r])
        b1f = b1f.at[0, r * Hp:r * Hp + H].set(b1[r])
        w2f = w2f.at[r * Hp:r * Hp + H, r * A:(r + 1) * A].set(w2[r])
    # Constant-1 hidden lane: relu(0 + 1) == 1; matching w2 row carries layer-2 biases.
    b1f = b1f.at[0, const].set(1.0)
    w2f = w2f.at[const, :].set(b2.reshape(-1))

    # Precompose the actor layer: logits = h @ (w2f @ wa) + ba (ba rides the const row).
    w3 = w2f @ wa
    w3 = w3.at[const, :].add(ba[0])

    # One lane-dense output block: [comb (R*A) | logits (A) | zero pad to mult of 128].
    ncols = ra + A
    ncols_p = max(lane, -(-ncols // lane) * lane)
    w2cat = jnp.zeros((R * Hp, ncols_p), jnp.float32)
    w2cat = w2cat.at[:, :ra].set(w2f)
    w2cat = w2cat.at[:, ra:ncols].set(w3)

    return {
        "w1": w1f.astype(jnp.bfloat16),          # bf16 weights, f32 accumulate in-kernel
        "b1": b1f,                               # f32, added post-accumulate (VPU)
        "w2cat": w2cat.astype(jnp.bfloat16),
        "reward_types": int(R), "actions": int(A),
        "out_lanes": int(ncols_p),
    }


def ref_forward(x, params):
    """Pure-JAX f32 reference mirroring the PyTorch forward (raw params)."""
    w1, b1, w2, b2 = params["w1"], params["b1"], params["w2"], params["b2"]
    wa, ba = params["wa"], params["ba"]
    outs = []
    for r in range(w1.shape[0]):
        h = jnp.maximum(x @ w1[r] + b1[r], 0.0)
        outs.append(h @ w2[r] + b2[r])
    comb = jnp.stack(outs)                       # (R, A)  == torch.stack
    flat = comb.reshape(-1)                      # x.view(actor_input_size)
    logits = flat @ wa + ba[0]
    prob = jax.nn.softmax(logits, axis=0)        # F.softmax(dim=0)
    return prob, comb


if __name__ == "__main__":
    input_size, actions, reward_types = 32, 8, 4

    key = jax.random.PRNGKey(0)
    k_x, k_p = jax.random.split(key)
    x = jax.random.normal(k_x, (input_size,), jnp.float32)
    params = make_params(k_p, input_size, actions, reward_types)
    packed = pack_params(params)                 # one-time weight repack

    prob, comb = policy_net_1d(x, packed)
    jax.block_until_ready((prob, comb))

    prob_ref, comb_ref = ref_forward(x, params)
    assert prob.shape == (actions,) and comb.shape == (reward_types, actions)
    # Tolerances reflect bf16 weight quantization + precomposed actor associativity
    # + approx reciprocal in the softmax (all sanctioned by the perf review).
    assert jnp.allclose(prob, prob_ref, atol=2e-3, rtol=2e-3)
    assert jnp.allclose(comb, comb_ref, atol=5e-2, rtol=5e-2)
    assert jnp.allclose(jnp.sum(prob), 1.0, atol=2e-3)

    print("KERNEL_OK")
</pallas_src>

<mosaic_0001>
module attributes {stable_mosaic.version = 11 : i64} {
  func.func @policy_net_1d_kernel(%arg0: memref<1x32xf32, #tpu.memory_space<vmem>>, %arg1: memref<32x512xbf16, #tpu.memory_space<vmem>>, %arg2: memref<1x512xf32, #tpu.memory_space<vmem>>, %arg3: memref<512x128xbf16, #tpu.memory_space<vmem>>, %arg4: memref<1x128xf32, #tpu.memory_space<vmem>>) attributes {dimension_semantics = [], scalar_prefetch = 0 : i64, scratch_operands = 0 : i64, tpu.core_type = #tpu.core_type<tc>} {
    %c0 = arith.constant 0 : index
    %c0_0 = arith.constant 0 : index
    %0 = vector.load %arg0[%c0, %c0_0] : memref<1x32xf32, #tpu.memory_space<vmem>>, vector<1x32xf32>
    %1 = arith.truncf %0 : vector<1x32xf32> to vector<1x32xbf16>
    %c0_1 = arith.constant 0 : index
    %c0_2 = arith.constant 0 : index
    %2 = vector.load %arg1[%c0_1, %c0_2] : memref<32x512xbf16, #tpu.memory_space<vmem>>, vector<32x512xbf16>
    %cst = arith.constant dense<0.000000e+00> : vector<1x512xf32>
    %3 = tpu.matmul %1, %2, %cst {dimension_numbers = #tpu.dot_dimension_numbers<[1], [0], [0], [1], [0, 0, 1, 1], [], []>} : vector<1x32xbf16>, vector<32x512xbf16>, vector<1x512xf32> -> vector<1x512xf32>
    %c0_3 = arith.constant 0 : index
    %c0_4 = arith.constant 0 : index
    %4 = vector.load %arg2[%c0_3, %c0_4] : memref<1x512xf32, #tpu.memory_space<vmem>>, vector<1x512xf32>
    %5 = arith.addf %3, %4 : vector<1x512xf32>
    %cst_5 = arith.constant 0.000000e+00 : f32
    %6 = vector.broadcast %cst_5 : f32 to vector<1x512xf32>
    %7 = arith.maximumf %5, %6 : vector<1x512xf32>
    %8 = arith.truncf %7 : vector<1x512xf32> to vector<1x512xbf16>
    %c0_6 = arith.constant 0 : index
    %c0_7 = arith.constant 0 : index
    %9 = vector.load %arg3[%c0_6, %c0_7] : memref<512x128xbf16, #tpu.memory_space<vmem>>, vector<512x128xbf16>
    %cst_8 = arith.constant dense<0.000000e+00> : vector<1x128xf32>
    %10 = tpu.matmul %8, %9, %cst_8 {dimension_numbers = #tpu.dot_dimension_numbers<[1], [0], [0], [1], [0, 0, 1, 1], [], []>} : vector<1x512xbf16>, vector<512x128xbf16>, vector<1x128xf32> -> vector<1x128xf32>
    %11 = tpu.iota {dimensions = array<i32: 1>} : vector<1x128xi32>
    %c32_i32 = arith.constant 32 : i32
    %12 = vector.broadcast %c32_i32 : i32 to vector<1x128xi32>
    %13 = arith.cmpi sge, %11, %12 : vector<1x128xi32>
    %c40_i32 = arith.constant 40 : i32
    %14 = vector.broadcast %c40_i32 : i32 to vector<1x128xi32>
    %15 = arith.cmpi slt, %11, %14 : vector<1x128xi32>
    %16 = arith.andi %13, %15 : vector<1x128xi1>
    %cst_9 = arith.constant -1.000000e+30 : f32
    %17 = vector.broadcast %cst_9 : f32 to vector<1x128xf32>
    %18 = arith.select %16, %10, %17 : vector<1x128xi1>, vector<1x128xf32>
    %cst_10 = arith.constant dense<0xFF800000> : vector<1xf32>
    %19 = vector.multi_reduction <maximumf>, %18, %cst_10 [1] : vector<1x128xf32> to vector<1xf32>
    %20 = vector.shape_cast %19 : vector<1xf32> to vector<1x1xf32>
    %21 = vector.broadcast %20 : vector<1x1xf32> to vector<1x128xf32>
    %22 = arith.subf %18, %21 : vector<1x128xf32>
    %23 = math.exp %22 : vector<1x128xf32>
    %cst_11 = arith.constant 0.000000e+00 : f32
    %24 = vector.broadcast %cst_11 : f32 to vector<1x128xf32>
    %25 = arith.select %16, %23, %24 : vector<1x128xi1>, vector<1x128xf32>
    %cst_12 = arith.constant dense<0.000000e+00> : vector<1xf32>
    %26 = vector.multi_reduction <add>, %25, %cst_12 [1] : vector<1x128xf32> to vector<1xf32>
    %27 = vector.shape_cast %26 : vector<1xf32> to vector<1x1xf32>
    %28 = tpu.reciprocal %27 {approx = true} : vector<1x1xf32> -> vector<1x1xf32>
    %29 = vector.broadcast %28 : vector<1x1xf32> to vector<1x128xf32>
    %30 = arith.mulf %25, %29 : vector<1x128xf32>
    %31 = arith.select %16, %30, %10 : vector<1x128xi1>, vector<1x128xf32>
    %c0_13 = arith.constant 0 : index
    %c0_14 = arith.constant 0 : index
    %32 = vector.load %arg4[%c0_13, %c0_14] : memref<1x128xf32, #tpu.memory_space<vmem>>, vector<1x128xf32>
    tpu.vector_store %arg4[%c0_13, %c0_14], %31 {strides = array<i32>} : memref<1x128xf32, #tpu.memory_space<vmem>>, vector<1x128xf32>,
    return
  }
}

</mosaic_0001>

<llo_original>
// kernel: tpu_custom_call.1
$region0: #{tpu_custom_call.1}
  #allocation0 [shape = 'u32[]', space=smem, size = 0x4, offset = 0x4, fixed_abs, tag = 'smem constant byte address 0x4 - core index']
  #allocation1 [shape = 'u32[144,128]{1,0:T(1,128)}', space=vmem, size = 0x12000, scoped, tag = 'internal scratch']
  %s0 = inlined_call_operand.hbm [shape: f32[1,32], index: 0, kind: input, shape index: {}]
  %s1 = inlined_call_operand.hbm [shape: bf16[32,512], index: 1, kind: input, shape index: {}]
  %s2 = inlined_call_operand.vmem [shape: f32[1,512], index: 2, kind: input, shape index: {}]
  %s3 = inlined_call_operand.hbm [shape: bf16[512,128], index: 3, kind: input, shape index: {}]
  %s4 = inlined_call_operand.hbm [shape: f32[1,128], index: 4, kind: output, shape index: {}]
  %s5 = sld [smem:[#allocation0]]
  $region38: #{tpu_custom_call.1} parent=0
    _
  %s7 = ssub.s32 1, %s5
  %s8 = scalar_select 0, %s7, %s5
  $region1: #{tpu_custom_call.1} parent=0
    #allocation2 [shape = 'u8[512]{0}', space=vmem, size = 0x400, scoped, tag = 'input window, operand 0, single buffered']
    #allocation3 [shape = 's32[1]{0}', space=sflag, size = 0x4, scoped, tag = 'scoped memory for tpu_custom_call.1']
    #allocation4 [shape = 's32[1]{0}', space=sflag, size = 0x4, scoped, tag = 'scoped memory for tpu_custom_call.1']
    #allocation5 [shape = 'u8[32768]{0}', space=vmem, size = 0x8000, scoped, tag = 'input window, operand 1, single buffered']
    #allocation6 [shape = 's32[1]{0}', space=sflag, size = 0x4, scoped, tag = 'scoped memory for tpu_custom_call.1']
    #allocation7 [shape = 'u8[131072]{0}', space=vmem, size = 0x20000, scoped, tag = 'input window, operand 3, single buffered']
    #allocation8 [shape = 'u8[512]{0}', space=vmem, size = 0x400, scoped, tag = 'output window, operand 0, single buffered']
    %9 = vsyncpa [#allocation3], 0
    %10 = vsyncpa [#allocation6], 0
    %11 = vsyncpa [#allocation4], 0
    // Predicated region
    $region2: #{tpu_custom_call.1} parent=1 // pred_check
      _
    $region3: #{tpu_custom_call.1} parent=1 // pred_check_branch
      %13 = sbr.rel (0) target = $region5
    $region4: #{tpu_custom_call.1} parent=1 // pred_region
      %s15 = ssub.s32 16, 16
      %16 = vsyncadd [#allocation3], %s15
      %s18 = sshll.u32 [#allocation2], 4
      %s19 = int_to_ptr.vmem [resolvable:$true] %s18
      %21 = dma.hbm_to_vmem [thread:$0]  %s0, 16, %s19, [#allocation3]
    $region5: #{tpu_custom_call.1} parent=1 // pred_fallthru
      _
    // Predicated region
    $region6: #{tpu_custom_call.1} parent=1 // pred_check
      _
    $region7: #{tpu_custom_call.1} parent=1 // pred_check_branch
      %23 = sbr.rel (0) target = $region9
    $region8: #{tpu_custom_call.1} parent=1 // pred_region
      %s25 = ssub.s32 1024, 1024
      %26 = vsyncadd [#allocation6], %s25
      %s27 = sshll.u32 [#allocation5], 4
      %s28 = int_to_ptr.vmem [resolvable:$true] %s27
      %33 = dma.hbm_to_vmem [thread:$0]  %s1, 1024, %s28, [#allocation6], 256, 256, 16
    $region9: #{tpu_custom_call.1} parent=1 // pred_fallthru
      _
    // Predicated region
    $region10: #{tpu_custom_call.1} parent=1 // pred_check
      _
    $region11: #{tpu_custom_call.1} parent=1 // pred_check_branch
      %35 = sbr.rel (0) target = $region13
    $region12: #{tpu_custom_call.1} parent=1 // pred_region
      _
    $region13: #{tpu_custom_call.1} parent=1 // pred_fallthru
      _
    // Predicated region
    $region14: #{tpu_custom_call.1} parent=1 // pred_check
      _
    $region15: #{tpu_custom_call.1} parent=1 // pred_check_branch
      %37 = sbr.rel (0) target = $region17
    $region16: #{tpu_custom_call.1} parent=1 // pred_region
      %s39 = ssub.s32 4096, 4096
      %40 = vsyncadd [#allocation6], %s39
      %s41 = sshll.u32 [#allocation7], 4
      %s42 = int_to_ptr.vmem [resolvable:$true] %s41
      %47 = dma.hbm_to_vmem [thread:$0]  %s3, 4096, %s42, [#allocation6], 64, 64, 4
    $region17: #{tpu_custom_call.1} parent=1 // pred_fallthru
      _
    // Predicated region
    $region18: #{tpu_custom_call.1} parent=1 // pred_check
      _
    $region19: #{tpu_custom_call.1} parent=1 // pred_check_branch
      %49 = sbr.rel (0) target = $region21
    $region20: #{tpu_custom_call.1} parent=1 // pred_region
      %50 = dma.done [#allocation3], 16
    $region21: #{tpu_custom_call.1} parent=1 // pred_fallthru
      _
    // Predicated region
    $region22: #{tpu_custom_call.1} parent=1 // pred_check
      _
    $region23: #{tpu_custom_call.1} parent=1 // pred_check_branch
      %52 = sbr.rel (0) target = $region25
    $region24: #{tpu_custom_call.1} parent=1 // pred_region
      %53 = dma.done [#allocation6], 1024
    $region25: #{tpu_custom_call.1} parent=1 // pred_fallthru
      _
    // Predicated region
    $region26: #{tpu_custom_call.1} parent=1 // pred_check
      _
    $region27: #{tpu_custom_call.1} parent=1 // pred_check_branch
      %55 = sbr.rel (0) target = $region29
    $region28: #{tpu_custom_call.1} parent=1 // pred_region
      %56 = dma.done [#allocation6], 4096
    $region29: #{tpu_custom_call.1} parent=1 // pred_fallthru
      _
    %v58 = vld [vmem:[#allocation2] sm:$0x1]
    %v59 = vpack.c.bf16 %v58, %v58
    %v60 = vld [vmem:[#allocation5] sm:$0xff]
    %v61 = vld [vmem:[#allocation5 + $0x8] sm:$0xff]
    %v62 = vld [vmem:[#allocation5 + $0x10] sm:$0xff]
    %v63 = vld [vmem:[#allocation5 + $0x18] sm:$0xff]
    %v64 = vld [vmem:[#allocation5 + $0x20] sm:$0xff]
    %v65 = vld [vmem:[#allocation5 + $0x28] sm:$0xff]
    %v66 = vld [vmem:[#allocation5 + $0x30] sm:$0xff]
    %v67 = vld [vmem:[#allocation5 + $0x38] sm:$0xff]
    %v68 = vld [vmem:[%s2] sm:$0xf]
    %v77 = vunpack.c.l.b16 %v60
    %v78 = vunpack.c.h.b16 %v60
    %v79 = vunpack.c.l.b16 %v61
    %v80 = vunpack.c.h.b16 %v61
    %v81 = vunpack.c.l.b16 %v62
    %v82 = vunpack.c.h.b16 %v62
    %v83 = vunpack.c.l.b16 %v63
    %v84 = vunpack.c.h.b16 %v63
    %v85 = vunpack.c.l.b16 %v64
    %v86 = vunpack.c.h.b16 %v64
    %v87 = vunpack.c.l.b16 %v65
    %v88 = vunpack.c.h.b16 %v65
    %v89 = vunpack.c.l.b16 %v66
    %v90 = vunpack.c.h.b16 %v66
    %v91 = vunpack.c.l.b16 %v67
    %v92 = vunpack.c.h.b16 %v67
    %v93 = vpack.c.b16 %v81, %v77
    %v94 = vpack.c.b16 %v82, %v78
    %v95 = vpack.c.b16 %v83, %v79
    %v96 = vpack.c.b16 %v84, %v80
    %v97 = vpack.c.b16 %v89, %v85
    %v98 = vpack.c.b16 %v90, %v86
    %v99 = vpack.c.b16 %v91, %v87
    %v100 = vpack.c.b16 %v92, %v88
    %v110 = vlaneseq
    %v111 = vshrl.u32 %v110, 7
    %v112 = vsub.s32 0, %v111
    %v113 = vrot.slane %v68, %v112
    %v114 = vlaneseq
    %v115 = vshrl.u32 %v114, 7
    %v116 = vsub.s32 1, %v115
    %v117 = vrot.slane %v68, %v116
    %v118 = vlaneseq
    %v119 = vshrl.u32 %v118, 7
    %v120 = vsub.s32 2, %v119
    %v121 = vrot.slane %v68, %v120
    %v122 = vlaneseq
    %v123 = vshrl.u32 %v122, 7
    %v124 = vsub.s32 3, %v123
    %v125 = vrot.slane %v68, %v124
    %vm130 = vcmask 261120
    %v132 = vsel %vm130, %v59, 0
    %134 = vmatprep.subr.bf16.mxu0 %v94
    %135 = vmatpush1.bf16.msra.mxu0 %v93
    %136 = vmatprep.subr.bf16.mxu0 %v98
    %137 = vmatpush1.bf16.msra.mxu0 %v97
    %138 = vmatprep.subr.bf16.mxu0 0
    %139 = vmatpush1.bf16.msra.mxu0 0
    %140 = vmatprep.subr.bf16.mxu0 0
    %141 = vmatpush1.bf16.msra.mxu0 0
    %142 = vmatprep.subr.bf16.mxu0 0
    %143 = vmatpush1.bf16.msra.mxu0 0
    %144 = vmatprep.subr.bf16.mxu0 0
    %145 = vmatpush1.bf16.msra.mxu0 0
    %146 = vmatprep.subr.bf16.mxu0 0
    %147 = vmatpush1.bf16.msra.mxu0 0
    %148 = vmatprep.subr.bf16.mxu0 0
    %149 = vmatpush1.bf16.msra.mxu0 0
    %150 = vmatprep.subr.bf16.mxu0 0
    %151 = vmatpush1.bf16.msra.mxu0 0
    %152 = vmatprep.subr.bf16.mxu0 0
    %153 = vmatpush1.bf16.msra.mxu0 0
    %154 = vmatprep.subr.bf16.mxu0 0
    %155 = vmatpush1.bf16.msra.mxu0 0
    %156 = vmatprep.subr.bf16.mxu0 0
    %157 = vmatpush1.bf16.msra.mxu0 0
    %158 = vmatprep.subr.bf16.mxu0 0
    %159 = vmatpush1.bf16.msra.mxu0 0
    %160 = vmatprep.subr.bf16.mxu0 0
    %161 = vmatpush1.bf16.msra.mxu0 0
    %162 = vmatprep.subr.bf16.mxu0 0
    %163 = vmatpush1.bf16.msra.mxu0 0
    %164 = vmatprep.subr.bf16.mxu0 0
    %165 = vmatpush1.bf16.msra.mxu0 0
    %166 = vmatprep.mubr.bf16.mxu0 0
    %167 = vmatmul.mubr.bf16.gmra.mrb[0].mxu0 %v132
    %v168 = vpop.f32.mrb[0].mxu0
    %v169 = vadd.f32 %v113, %v168
    %v170 = vpop.f32.mrb[0].mxu0
    %v171 = vadd.f32 %v117, %v170
    %v172 = vpop.f32.mrb[0].mxu0
    %v173 = vpop.f32.mrb[0].mxu0
    %174 = vdwg.mxu0
    %175 = vmatprep.subr.bf16.mxu0 %v96
    %176 = vmatpush1.bf16.msra.mxu0 %v95
    %177 = vmatprep.subr.bf16.mxu0 %v100
    %178 = vmatpush1.bf16.msra.mxu0 %v99
    %179 = vmatprep.subr.bf16.mxu0 0
    %180 = vmatpush1.bf16.msra.mxu0 0
    %181 = vmatprep.subr.bf16.mxu0 0
    %182 = vmatpush1.bf16.msra.mxu0 0
    %183 = vmatprep.subr.bf16.mxu0 0
    %184 = vmatpush1.bf16.msra.mxu0 0
    %185 = vmatprep.subr.bf16.mxu0 0
    %186 = vmatpush1.bf16.msra.mxu0 0
    %187 = vmatprep.subr.bf16.mxu0 0
    %188 = vmatpush1.bf16.msra.mxu0 0
    %189 = vmatprep.subr.bf16.mxu0 0
    %190 = vmatpush1.bf16.msra.mxu0 0
    %191 = vmatprep.subr.bf16.mxu0 0
    %192 = vmatpush1.bf16.msra.mxu0 0
    %193 = vmatprep.subr.bf16.mxu0 0
    %194 = vmatpush1.bf16.msra.mxu0 0
    %195 = vmatprep.subr.bf16.mxu0 0
    %196 = vmatpush1.bf16.msra.mxu0 0
    %197 = vmatprep.subr.bf16.mxu0 0
    %198 = vmatpush1.bf16.msra.mxu0 0
    %199 = vmatprep.subr.bf16.mxu0 0
    %200 = vmatpush1.bf16.msra.mxu0 0
    %201 = vmatprep.subr.bf16.mxu0 0
    %202 = vmatpush1.bf16.msra.mxu0 0
    %203 = vmatprep.subr.bf16.mxu0 0
    %204 = vmatpush1.bf16.msra.mxu0 0
    %205 = vmatprep.subr.bf16.mxu0 0
    %206 = vmatpush1.bf16.msra.mxu0 0
    %207 = vmatprep.mubr.bf16.mxu0 0
    %208 = vmatmul.mubr.bf16.gmra.mrb[0].mxu0 %v132
    %v209 = vpop.f32.mrb[0].mxu0
    %v210 = vadd.f32 %v121, %v209
    %v211 = vpop.f32.mrb[0].mxu0
    %v212 = vadd.f32 %v125, %v211
    %v213 = vpop.f32.mrb[0].mxu0
    %v214 = vpop.f32.mrb[0].mxu0
    %215 = vdwg.mxu0
    %v216 = vmax.f32 %v169, 0.0
    %v217 = vmax.f32 %v171, 0.0
    %v218 = vmax.f32 %v210, 0.0
    %v219 = vmax.f32 %v212, 0.0
    %v220 = vpack.c.bf16 %v216, %v216
    %v221 = vpack.c.bf16 %v217, %v217
    %v222 = vpack.c.bf16 %v218, %v218
    %v223 = vpack.c.bf16 %v219, %v219
    %v224 = vld [vmem:[#allocation7] sm:$0xf]
    %v225 = vld [vmem:[#allocation7 + $0x4] sm:$0xf]
    %v226 = vld [vmem:[#allocation7 + $0x8] sm:$0xf]
    %v227 = vld [vmem:[#allocation7 + $0xc] sm:$0xf]
    %v228 = vld [vmem:[#allocation7 + $0x10] sm:$0xf]
    %v229 = vld [vmem:[#allocation7 + $0x14] sm:$0xf]
    %v230 = vld [vmem:[#allocation7 + $0x18] sm:$0xf]
    %v231 = vld [vmem:[#allocation7 + $0x1c] sm:$0xf]
    %v232 = vld [vmem:[#allocation7 + $0x20] sm:$0xf]
    %v233 = vld [vmem:[#allocation7 + $0x24] sm:$0xf]
    %v234 = vld [vmem:[#allocation7 + $0x28] sm:$0xf]
    %v235 = vld [vmem:[#allocation7 + $0x2c] sm:$0xf]
    %v236 = vld [vmem:[#allocation7 + $0x30] sm:$0xf]
    %v237 = vld [vmem:[#allocation7 + $0x34] sm:$0xf]
    %v238 = vld [vmem:[#allocation7 + $0x38] sm:$0xf]
    %v239 = vld [vmem:[#allocation7 + $0x3c] sm:$0xf]
    %v240 = vld [vmem:[#allocation7 + $0x40] sm:$0xf]
    %v241 = vld [vmem:[#allocation7 + $0x44] sm:$0xf]
    %v242 = vld [vmem:[#allocation7 + $0x48] sm:$0xf]
    %v243 = vld [vmem:[#allocation7 + $0x4c] sm:$0xf]
    %v244 = vld [vmem:[#allocation7 + $0x50] sm:$0xf]
    %v245 = vld [vmem:[#allocation7 + $0x54] sm:$0xf]
    %v246 = vld [vmem:[#allocation7 + $0x58] sm:$0xf]
    %v247 = vld [vmem:[#allocation7 + $0x5c] sm:$0xf]
    %v248 = vld [vmem:[#allocation7 + $0x60] sm:$0xf]
    %v249 = vld [vmem:[#allocation7 + $0x64] sm:$0xf]
    %v250 = vld [vmem:[#allocation7 + $0x68] sm:$0xf]
    %v251 = vld [vmem:[#allocation7 + $0x6c] sm:$0xf]
    %v252 = vld [vmem:[#allocation7 + $0x70] sm:$0xf]
    %v253 = vld [vmem:[#allocation7 + $0x74] sm:$0xf]
    %v254 = vld [vmem:[#allocation7 + $0x78] sm:$0xf]
    %v255 = vld [vmem:[#allocation7 + $0x7c] sm:$0xf]
    %v256 = vld [vmem:[#allocation7 + $0x80] sm:$0xf]
    %v257 = vld [vmem:[#allocation7 + $0x84] sm:$0xf]
    %v258 = vld [vmem:[#allocation7 + $0x88] sm:$0xf]
    %v259 = vld [vmem:[#allocation7 + $0x8c] sm:$0xf]
    %v260 = vld [vmem:[#allocation7 + $0x90] sm:$0xf]
    %v261 = vld [vmem:[#allocation7 + $0x94] sm:$0xf]
    %v262 = vld [vmem:[#allocation7 + $0x98] sm:$0xf]
    %v263 = vld [vmem:[#allocation7 + $0x9c] sm:$0xf]
    %v264 = vld [vmem:[#allocation7 + $0xa0] sm:$0xf]
    %v265 = vld [vmem:[#allocation7 + $0xa4] sm:$0xf]
    %v266 = vld [vmem:[#allocation7 + $0xa8] sm:$0xf]
    %v267 = vld [vmem:[#allocation7 + $0xac] sm:$0xf]
    %v268 = vld [vmem:[#allocation7 + $0xb0] sm:$0xf]
    %v269 = vld [vmem:[#allocation7 + $0xb4] sm:$0xf]
    %v270 = vld [vmem:[#allocation7 + $0xb8] sm:$0xf]
    %v271 = vld [vmem:[#allocation7 + $0xbc] sm:$0xf]
    %v272 = vld [vmem:[#allocation7 + $0xc0] sm:$0xf]
    %v273 = vld [vmem:[#allocation7 + $0xc4] sm:$0xf]
    %v274 = vld [vmem:[#allocation7 + $0xc8] sm:$0xf]
    %v275 = vld [vmem:[#allocation7 + $0xcc] sm:$0xf]
    %v276 = vld [vmem:[#allocation7 + $0xd0] sm:$0xf]
    %v277 = vld [vmem:[#allocation7 + $0xd4] sm:$0xf]
    %v278 = vld [vmem:[#allocation7 + $0xd8] sm:$0xf]
    %v279 = vld [vmem:[#allocation7 + $0xdc] sm:$0xf]
    %v280 = vld [vmem:[#allocation7 + $0xe0] sm:$0xf]
    %v281 = vld [vmem:[#allocation7 + $0xe4] sm:$0xf]
    %v282 = vld [vmem:[#allocation7 + $0xe8] sm:$0xf]
    %v283 = vld [vmem:[#allocation7 + $0xec] sm:$0xf]
    %v284 = vld [vmem:[#allocation7 + $0xf0] sm:$0xf]
    %v285 = vld [vmem:[#allocation7 + $0xf4] sm:$0xf]
    %v286 = vld [vmem:[#allocation7 + $0xf8] sm:$0xf]
    %v287 = vld [vmem:[#allocation7 + $0xfc] sm:$0xf]
    %v352 = vunpack.c.l.b16 %v224
    %v353 = vunpack.c.l.b16 %v225
    %v354 = vunpack.c.l.b16 %v226
    %v355 = vunpack.c.l.b16 %v227
    %v356 = vunpack.c.l.b16 %v228
    %v357 = vunpack.c.l.b16 %v229
    %v358 = vunpack.c.l.b16 %v230
    %v359 = vunpack.c.l.b16 %v231
    %v360 = vunpack.c.l.b16 %v232
    %v361 = vunpack.c.l.b16 %v233
    %v362 = vunpack.c.l.b16 %v234
    %v363 = vunpack.c.l.b16 %v235
    %v364 = vunpack.c.l.b16 %v236
    %v365 = vunpack.c.l.b16 %v237
    %v366 = vunpack.c.l.b16 %v238
    %v367 = vunpack.c.l.b16 %v239
    %v368 = vunpack.c.l.b16 %v240
    %v369 = vunpack.c.l.b16 %v241
    %v370 = vunpack.c.l.b16 %v242
    %v371 = vunpack.c.l.b16 %v243
    %v372 = vunpack.c.l.b16 %v244
    %v373 = vunpack.c.l.b16 %v245
    %v374 = vunpack.c.l.b16 %v246
    %v375 = vunpack.c.l.b16 %v247
    %v376 = vunpack.c.l.b16 %v248
    %v377 = vunpack.c.l.b16 %v249
    %v378 = vunpack.c.l.b16 %v250
    %v379 = vunpack.c.l.b16 %v251
    %v380 = vunpack.c.l.b16 %v252
    %v381 = vunpack.c.l.b16 %v253
    %v382 = vunpack.c.l.b16 %v254
    %v383 = vunpack.c.l.b16 %v255
    %v384 = vunpack.c.l.b16 %v256
    %v385 = vunpack.c.l.b16 %v257
    %v386 = vunpack.c.l.b16 %v258
    %v387 = vunpack.c.l.b16 %v259
    %v388 = vunpack.c.l.b16 %v260
    %v389 = vunpack.c.l.b16 %v261
    %v390 = vunpack.c.l.b16 %v262
    %v391 = vunpack.c.l.b16 %v263
    %v392 = vunpack.c.l.b16 %v264
    %v393 = vunpack.c.l.b16 %v265
    %v394 = vunpack.c.l.b16 %v266
    %v395 = vunpack.c.l.b16 %v267
    %v396 = vunpack.c.l.b16 %v268
    %v397 = vunpack.c.l.b16 %v269
    %v398 = vunpack.c.l.b16 %v270
    %v399 = vunpack.c.l.b16 %v271
    %v400 = vunpack.c.l.b16 %v272
    %v401 = vunpack.c.l.b16 %v273
    %v402 = vunpack.c.l.b16 %v274
    %v403 = vunpack.c.l.b16 %v275
    %v404 = vunpack.c.l.b16 %v276
    %v405 = vunpack.c.l.b16 %v277
    %v406 = vunpack.c.l.b16 %v278
    %v407 = vunpack.c.l.b16 %v279
    %v408 = vunpack.c.l.b16 %v280
    %v409 = vunpack.c.l.b16 %v281
    %v410 = vunpack.c.l.b16 %v282
    %v411 = vunpack.c.l.b16 %v283
    %v412 = vunpack.c.l.b16 %v284
    %v413 = vunpack.c.l.b16 %v285
    %v414 = vunpack.c.l.b16 %v286
    %v415 = vunpack.c.l.b16 %v287
    %v416 = vpack.c.b16 %v353, %v352
    %v417 = vpack.c.b16 %v355, %v354
    %v418 = vpack.c.b16 %v357, %v356
    %v419 = vpack.c.b16 %v359, %v358
    %v420 = vpack.c.b16 %v361, %v360
    %v421 = vpack.c.b16 %v363, %v362
    %v422 = vpack.c.b16 %v365, %v364
    %v423 = vpack.c.b16 %v367, %v366
    %v424 = vpack.c.b16 %v369, %v368
    %v425 = vpack.c.b16 %v371, %v370
    %v426 = vpack.c.b16 %v373, %v372
    %v427 = vpack.c.b16 %v375, %v374
    %v428 = vpack.c.b16 %v377, %v376
    %v429 = vpack.c.b16 %v379, %v378
    %v430 = vpack.c.b16 %v381, %v380
    %v431 = vpack.c.b16 %v383, %v382
    %v432 = vpack.c.b16 %v385, %v384
    %v433 = vpack.c.b16 %v387, %v386
    %v434 = vpack.c.b16 %v389, %v388
    %v435 = vpack.c.b16 %v391, %v390
    %v436 = vpack.c.b16 %v393, %v392
    %v437 = vpack.c.b16 %v395, %v394
    %v438 = vpack.c.b16 %v397, %v396
    %v439 = vpack.c.b16 %v399, %v398
    %v440 = vpack.c.b16 %v401, %v400
    %v441 = vpack.c.b16 %v403, %v402
    %v442 = vpack.c.b16 %v405, %v404
    %v443 = vpack.c.b16 %v407, %v406
    %v444 = vpack.c.b16 %v409, %v408
    %v445 = vpack.c.b16 %v411, %v410
    %v446 = vpack.c.b16 %v413, %v412
    %v447 = vpack.c.b16 %v415, %v414
    %480 = vmatprep.subr.bf16.mxu0 0
    %481 = vmatpush1.bf16.msra.mxu0 %v416
    %482 = vmatprep.subr.bf16.mxu0 0
    %483 = vmatpush1.bf16.msra.mxu0 %v417
    %484 = vmatprep.subr.bf16.mxu0 0
    %485 = vmatpush1.bf16.msra.mxu0 %v418
    %486 = vmatprep.subr.bf16.mxu0 0
    %487 = vmatpush1.bf16.msra.mxu0 %v419
    %488 = vmatprep.subr.bf16.mxu0 0
    %489 = vmatpush1.bf16.msra.mxu0 %v420
    %490 = vmatprep.subr.bf16.mxu0 0
    %491 = vmatpush1.bf16.msra.mxu0 %v421
    %492 = vmatprep.subr.bf16.mxu0 0
    %493 = vmatpush1.bf16.msra.mxu0 %v422
    %494 = vmatprep.subr.bf16.mxu0 0
    %495 = vmatpush1.bf16.msra.mxu0 %v423
    %496 = vmatprep.subr.bf16.mxu0 0
    %497 = vmatpush1.bf16.msra.mxu0 %v424
    %498 = vmatprep.subr.bf16.mxu0 0
    %499 = vmatpush1.bf16.msra.mxu0 %v425
    %500 = vmatprep.subr.bf16.mxu0 0
    %501 = vmatpush1.bf16.msra.mxu0 %v426
    %502 = vmatprep.subr.bf16.mxu0 0
    %503 = vmatpush1.bf16.msra.mxu0 %v427
    %504 = vmatprep.subr.bf16.mxu0 0
    %505 = vmatpush1.bf16.msra.mxu0 %v428
    %506 = vmatprep.subr.bf16.mxu0 0
    %507 = vmatpush1.bf16.msra.mxu0 %v429
    %508 = vmatprep.subr.bf16.mxu0 0
    %509 = vmatpush1.bf16.msra.mxu0 %v430
    %510 = vmatprep.subr.bf16.mxu0 0
    %511 = vmatpush1.bf16.msra.mxu0 %v431
    %512 = vmatprep.mubr.bf16.mxu0 %v221
    %513 = vmatmul.mubr.bf16.gmra.mrb[0].mxu0 %v220
    %v514 = vpop.f32.mrb[0].mxu0
    %v515 = vadd.f32 0.0, %v514
    %v516 = vpop.f32.mrb[0].mxu0
    %v517 = vpop.f32.mrb[0].mxu0
    %v518 = vpop.f32.mrb[0].mxu0
    %519 = vdwg.mxu0
    %520 = vmatprep.subr.bf16.mxu0 0
    %521 = vmatpush1.bf16.msra.mxu0 %v432
    %522 = vmatprep.subr.bf16.mxu0 0
    %523 = vmatpush1.bf16.msra.mxu0 %v433
    %524 = vmatprep.subr.bf16.mxu0 0
    %525 = vmatpush1.bf16.msra.mxu0 %v434
    %526 = vmatprep.subr.bf16.mxu0 0
    %527 = vmatpush1.bf16.msra.mxu0 %v435
    %528 = vmatprep.subr.bf16.mxu0 0
    %529 = vmatpush1.bf16.msra.mxu0 %v436
    %530 = vmatprep.subr.bf16.mxu0 0
    %531 = vmatpush1.bf16.msra.mxu0 %v437
    %532 = vmatprep.subr.bf16.mxu0 0
    %533 = vmatpush1.bf16.msra.mxu0 %v438
    %534 = vmatprep.subr.bf16.mxu0 0
    %535 = vmatpush1.bf16.msra.mxu0 %v439
    %536 = vmatprep.subr.bf16.mxu0 0
    %537 = vmatpush1.bf16.msra.mxu0 %v440
    %538 = vmatprep.subr.bf16.mxu0 0
    %539 = vmatpush1.bf16.msra.mxu0 %v441
    %540 = vmatprep.subr.bf16.mxu0 0
    %541 = vmatpush1.bf16.msra.mxu0 %v442
    %542 = vmatprep.subr.bf16.mxu0 0
    %543 = vmatpush1.bf16.msra.mxu0 %v443
    %544 = vmatprep.subr.bf16.mxu0 0
    %545 = vmatpush1.bf16.msra.mxu0 %v444
    %546 = vmatprep.subr.bf16.mxu0 0
    %547 = vmatpush1.bf16.msra.mxu0 %v445
    %548 = vmatprep.subr.bf16.mxu0 0
    %549 = vmatpush1.bf16.msra.mxu0 %v446
    %550 = vmatprep.subr.bf16.mxu0 0
    %551 = vmatpush1.bf16.msra.mxu0 %v447
    %552 = vmatprep.mubr.bf16.mxu0 %v223
    %553 = vmatmul.mubr.bf16.gmra.mrb[0].mxu0 %v222
    %v554 = vpop.f32.mrb[0].mxu0
    %v555 = vadd.f32 %v515, %v554
    %v556 = vpop.f32.mrb[0].mxu0
    %v557 = vpop.f32.mrb[0].mxu0
    %v558 = vpop.f32.mrb[0].mxu0
    %559 = vdwg.mxu0
    %v560 = vlaneseq
    %v561 = vand.u32 %v560, 127
    %vm562 = vcmp.ge.s32.totalorder %v561, 32
    %vm563 = vcmp.lt.s32.totalorder %v561, 40
    %vm564 = vmand %vm562, %vm563
    %v565 = vsel %vm564, %v555, -1e+30
    %vm566 = vcmask 1040384
    %v567 = vsel %vm566, %v565, -inf
    %568 = vmax.xlane.f32.xlu0 %v567
    %v569 = vpop.xlane.xlu0 %568
    %v570 = vsub.f32 %v565, %v569
    %v571 = vmul.f32 %v570, 1.442695
    %v572 = vpow.pop %v571
    %v573 = vsel %vm564, %v572, 0.0
    %v574 = vsel %vm566, %v573, 0.0
    %575 = vadd.xlane.f32.xlu0 %v574
    %v576 = vpop.xlane.xlu0 %575
    %v577 = vrcp.pop %v576
    %v578 = vmul.f32 %v573, %v577
    %v579 = vsel %vm564, %v578, %v555
    %580 = vst [vmem:[#allocation8] sm:$0x1] %v579
    // Predicated region
    $region30: #{tpu_custom_call.1} parent=1 // pred_check
      _
    $region31: #{tpu_custom_call.1} parent=1 // pred_check_branch
      %582 = sbr.rel (0) target = $region33
    $region32: #{tpu_custom_call.1} parent=1 // pred_region
      %s584 = ssub.s32 16, 16
      %585 = vsyncadd [#allocation4], %s584
      %s587 = sshll.u32 [#allocation8], 4
      %s588 = int_to_ptr.vmem [resolvable:$true] %s587
      %590 = dma.vmem_to_hbm [thread:$0]  %s588, 16, %s4, [#allocation4]
    $region33: #{tpu_custom_call.1} parent=1 // pred_fallthru
      _
    // Predicated region
    $region34: #{tpu_custom_call.1} parent=1 // pred_check
      _
    $region35: #{tpu_custom_call.1} parent=1 // pred_check_branch
      %592 = sbr.rel (0) target = $region37
    $region36: #{tpu_custom_call.1} parent=1 // pred_region
      %593 = dma.done [#allocation4], 16
    $region37: #{tpu_custom_call.1} parent=1 // pred_fallthru
      _
    %594 = vsyncpa [#allocation3], 1
    %595 = vsyncpa [#allocation6], 1
    %596 = vsyncpa [#allocation4], 1

</llo_original>
